<compile_context>
chip_gen: v7x
topology: tpu7x:2x2x1
jax: 0.10.0
libtpu: 0.0.40
codegen_flags: <defaults>
</compile_context>

<pallas_src>
import functools

import numpy as np
import jax
import jax.numpy as jnp
from jax.experimental import pallas as pl
from jax.experimental.pallas import tpu as pltpu


# ----------------- table precompute (hoist to cache-build time) --------------
def make_rope_tables(cos, sin, head_dim):
    """(1, max_seq, 1, rot_half) cos/sin -> (max_seq, 2*head_dim) float32 table.

    Lanes [0, head_dim):            interleaved cos, padded with 1 past rot_dim.
    Lanes [head_dim, 2*head_dim):   parity-signed interleaved sin (-sin on even
                                    lanes, +sin on odd), padded with 0.
    Depends only on the cache + head_dim -> build ONCE and reuse every call.
    Not tiled across heads: the kernel broadcasts over heads in VMEM.
    """
    rot_half = cos.shape[-1]
    rot_dim = 2 * rot_half
    assert head_dim % 2 == 0, "head_dim must be even for interleaved RoPE"
    assert rot_dim <= head_dim, "rot_dim must not exceed head_dim"
    max_seq = cos.shape[1]

    c = jnp.repeat(cos.reshape(max_seq, rot_half).astype(jnp.float32), 2, axis=-1)
    s = jnp.repeat(sin.reshape(max_seq, rot_half).astype(jnp.float32), 2, axis=-1)
    sign = jnp.where(jnp.arange(rot_dim) % 2 == 0, -1.0, 1.0).astype(jnp.float32)
    s = s * sign
    pad = head_dim - rot_dim
    if pad:
        c = jnp.pad(c, ((0, 0), (0, pad)), constant_values=1.0)
        s = jnp.pad(s, ((0, 0), (0, pad)), constant_values=0.0)
    return jnp.concatenate([c, s], axis=-1)            # (max_seq, 2*head_dim)


# ------------------------------- kernel bodies -------------------------------
def _rotate_full_width(x_f32, c, s):
    """x_f32: (R, H*D) f32; c/s broadcastable to it (interleaved cos / signed sin)."""
    hd = x_f32.shape[-1]
    # swapped[2i] = x[2i+1], swapped[2i+1] = x[2i]; built from two XLU lane
    # rolls + a parity select (wrap-around lanes never contribute: sin == 0
    # in any non-rotated tail and lane 0 / lane hd-1 use the in-bounds roll).
    left = pltpu.roll(x_f32, shift=hd - 1, axis=1)     # left[i]  = x[(i + 1) % hd]
    right = pltpu.roll(x_f32, shift=1, axis=1)         # right[i] = x[(i - 1) % hd]
    lane = jax.lax.broadcasted_iota(jnp.int32, x_f32.shape, 1)
    swapped = jnp.where((lane & 1) == 0, left, right)
    return x_f32 * c + swapped * s


def _rope_prefill_kernel(*refs, num_heads, head_dim, rem):
    # refs: x (1, ts, HD), tab_lo (ts, 2D)[, tab_hi (ts, 2D)], out (1, ts, HD)
    if rem:
        x_ref, tlo_ref, thi_ref, o_ref = refs
        # Rows [rem, ts) of the lo block followed by rows [0, rem) of the hi
        # block == table rows [pos + r*ts, pos + (r+1)*ts).  Static slices.
        tab = jnp.concatenate([tlo_ref[rem:, :], thi_ref[:rem, :]], axis=0)
    else:
        x_ref, tlo_ref, o_ref = refs
        tab = tlo_ref[...]                              # (ts, 2D)
    x = x_ref[0].astype(jnp.float32)                    # (ts, HD)
    c = jnp.tile(tab[:, :head_dim], (1, num_heads))     # head broadcast in VMEM
    s = jnp.tile(tab[:, head_dim:], (1, num_heads))
    o_ref[0] = _rotate_full_width(x, c, s).astype(o_ref.dtype)


def _rope_decode_kernel(pos_ref, x_ref, tab_ref, o_ref, *, num_heads, head_dim,
                        tab_blk):
    # pos_ref: SMEM (1,) int32 (scalar-prefetched); tab_ref: (tab_blk, 2D) block
    # containing table row `pos`; every x row uses that single row.
    tab = tab_ref[...]                                   # (tab_blk, 2D)
    rem = pos_ref[0] % tab_blk
    row_idx = jax.lax.broadcasted_iota(jnp.int32, tab.shape, 0)
    row = jnp.sum(jnp.where(row_idx == rem, tab, 0.0), axis=0, keepdims=True)
    c = jnp.tile(row[:, :head_dim], (1, num_heads))      # (1, HD) -> broadcasts
    s = jnp.tile(row[:, head_dim:], (1, num_heads))
    x = x_ref[0].astype(jnp.float32)                     # (rows, HD)
    o_ref[0] = _rotate_full_width(x, c, s).astype(o_ref.dtype)


# ------------------------------ launch helpers -------------------------------
def _chip_budget():
    """(x-block target bytes, scoped vmem limit) chosen per chip generation."""
    try:
        vmem = pltpu.get_tpu_info().vmem_capacity_bytes
    except Exception:
        vmem = 64 * 1024 * 1024                          # conservative default
    if vmem >= 100 * 1024 * 1024:                        # v5e / v6e: 128 MiB VMEM
        return 4 * 1024 * 1024, 64 * 1024 * 1024
    return 2 * 1024 * 1024, 32 * 1024 * 1024             # v7x: 64 MiB VMEM


def _pick_row_tile(rows, hd, itemsize, target_bytes, force_split=False):
    # Sublane alignment: 8 for f32, 16 for bf16, 32 for int8/fp8.
    align = max(8, 32 // max(1, itemsize))
    t = max(align, (target_bytes // max(1, hd * itemsize)) // align * align)
    rows_pad = ((rows + align - 1) // align) * align
    t = min(t, rows_pad)
    if force_split and rows_pad >= 2 * align:
        # Keep >= 2 grid steps on the only parallel axis (v7x dual-TC).
        t = min(t, max(align, (rows_pad // 2) // align * align))
    return t


def _rope_prefill(x3, table, pos):
    """x3: (B, S, HD); table: (max_seq_or_S, 2*D) f32.

    pos: static Python int (folded into the table index_map), or None meaning
    `table` is already position-sliced to exactly S rows.
    """
    B, S, hd = x3.shape
    two_d = table.shape[-1]
    D = two_d // 2
    H = hd // D
    target, vmem_limit = _chip_budget()
    ts = _pick_row_tile(S, hd, x3.dtype.itemsize, target, force_split=(B == 1))
    grid = (pl.cdiv(S, ts), B)        # seq outer, batch inner: table blocks are
                                      # reused across the inner batch axis.
    x_spec = pl.BlockSpec((1, ts, hd), lambda r, b: (b, r, 0))
    o_spec = pl.BlockSpec((1, ts, hd), lambda r, b: (b, r, 0))

    if pos is None:
        rem = 0
        tab_specs = [pl.BlockSpec((ts, two_d), lambda r, b: (r, 0))]
        tab_args = (table,)
    else:
        assert 0 <= pos and pos + S <= table.shape[0], "pos + seq_len > max_seq"
        lo = pos // ts
        rem = pos % ts
        last_blk = pl.cdiv(table.shape[0], ts) - 1
        lo_spec = pl.BlockSpec((ts, two_d), lambda r, b: (lo + r, 0))
        if rem:
            # Clamping the hi block is harmless: clamped rows only ever feed
            # x rows past S, which are masked out of the writeback.
            hi_spec = pl.BlockSpec(
                (ts, two_d),
                lambda r, b: (jnp.minimum(lo + r + 1, last_blk), 0))
            tab_specs = [lo_spec, hi_spec]
            tab_args = (table, table)
        else:
            tab_specs = [lo_spec]
            tab_args = (table,)

    kernel = functools.partial(_rope_prefill_kernel, num_heads=H, head_dim=D,
                               rem=rem)
    return pl.pallas_call(
        kernel,
        out_shape=jax.ShapeDtypeStruct(x3.shape, x3.dtype),
        grid=grid,
        in_specs=[x_spec] + tab_specs,
        out_specs=o_spec,
        compiler_params=pltpu.CompilerParams(
            dimension_semantics=("parallel", "parallel"),
            vmem_limit_bytes=vmem_limit),
        cost_estimate=pl.CostEstimate(
            flops=6 * x3.size,
            transcendentals=0,
            bytes_accessed=int(2 * x3.size * x3.dtype.itemsize
                               + 2 * S * two_d * 4)),
    )(x3, *tab_args)


def _rope_decode(x3, table, pos):
    """x3: (1, B, HD) (batch folded into the row dim); pos may be traced."""
    _, rows, hd = x3.shape
    two_d = table.shape[-1]
    D = two_d // 2
    H = hd // D
    max_seq = table.shape[0]
    tab_blk = 8 if max_seq >= 8 else max_seq
    target, vmem_limit = _chip_budget()
    ts = _pick_row_tile(rows, hd, x3.dtype.itemsize, target, force_split=True)
    pos_arr = jnp.asarray(pos, jnp.int32).reshape((1,))

    kernel = functools.partial(_rope_decode_kernel, num_heads=H, head_dim=D,
                               tab_blk=tab_blk)
    grid_spec = pltpu.PrefetchScalarGridSpec(
        num_scalar_prefetch=1,
        grid=(pl.cdiv(rows, ts),),
        in_specs=[
            pl.BlockSpec((1, ts, hd), lambda r, p: (0, r, 0)),
            pl.BlockSpec((tab_blk, two_d), lambda r, p: (p[0] // tab_blk, 0)),
        ],
        out_specs=pl.BlockSpec((1, ts, hd), lambda r, p: (0, r, 0)),
    )
    return pl.pallas_call(
        kernel,
        out_shape=jax.ShapeDtypeStruct(x3.shape, x3.dtype),
        grid_spec=grid_spec,
        compiler_params=pltpu.CompilerParams(
            dimension_semantics=("parallel",),
            vmem_limit_bytes=vmem_limit),
    )(pos_arr, x3, table)


# ------------------------------ Python wrapper -------------------------------
def llama_ms_rotary_embedding(x, cos, sin, pos, tables=None):
    """Pallas-backed equivalent of LlamaMSRotaryEmbedding.forward.

    x: (B, S, H, D); cos/sin: (1, max_seq, 1, rot_half); pos: int (or scalar).
    Pass `tables=make_rope_tables(cos, sin, D)` (built once) to skip the
    per-call table expansion.
    """
    B, S, H, D = x.shape
    assert D % 2 == 0, "head_dim must be even for interleaved RoPE"
    if tables is None:
        # Prefer building this once at cache-construction time and reusing it.
        tables = make_rope_tables(cos, sin, D)
    assert tables.shape[-1] == 2 * D
    hd = H * D

    if S == 1:
        # Decode: fold batch into the row dim; pos is scalar-prefetched so a
        # single compiled kernel serves every decoding step (pos may be traced).
        out3 = _rope_decode(x.reshape(1, B, hd), tables, pos)
    elif isinstance(pos, (int, np.integer)):
        out3 = _rope_prefill(x.reshape(B, S, hd), tables, int(pos))
    else:
        # TODO(synk): scalar-prefetch pos for traced-pos prefill as well; for
        # now slice the (head-deduped, Hx smaller) table outside the kernel.
        tab_s = jax.lax.dynamic_slice_in_dim(tables, pos, S, axis=0)
        out3 = _rope_prefill(x.reshape(B, S, hd), tab_s, None)
    return out3.reshape(B, S, H, D)


# ------------------------- cos/sin cache (module init) -----------------------
def get_cos_sin_cache(hidden_size, num_heads, max_seq_len,
                      theta=10000.0, head_scale=1.0, dtype=jnp.float32):
    head_dim = head_scale * hidden_size / num_heads
    assert float(head_dim).is_integer(), "head_scale*hidden/num_heads must be int"
    head_dim = float(head_dim)
    p = jnp.arange(0, 2 * (head_dim // 2), step=2, dtype=jnp.float32)
    freqs = 1.0 / theta ** (p / head_dim)
    idx = jnp.arange(max_seq_len, dtype=jnp.float32)
    freqs = jnp.outer(idx, freqs)
    cos = jnp.reshape(jnp.cos(freqs), (1, max_seq_len, 1, -1)).astype(dtype)
    sin = jnp.reshape(jnp.sin(freqs), (1, max_seq_len, 1, -1)).astype(dtype)
    return cos, sin


# ----------------------------- pure-JAX reference ----------------------------
def _reference_forward(x, cos, sin, pos):
    rot_dim = 2 * cos.shape[3]
    x_rot = x[:, :, :, :rot_dim]
    x1 = x_rot[:, :, :, 0::2]
    x2 = x_rot[:, :, :, 1::2]
    seq_len = x.shape[1]
    cos_x = cos[:, pos:pos + seq_len, :, :]
    sin_x = sin[:, pos:pos + seq_len, :, :]
    real = cos_x * x1 - sin_x * x2
    imag = sin_x * x1 + cos_x * x2
    rotated = jnp.stack([real, imag], axis=-1).reshape(x_rot.shape)
    return jnp.concatenate([rotated, x[:, :, :, rot_dim:]], axis=-1)


if __name__ == "__main__":
    # Small shapes implied by the module: hidden=256, heads=2 -> head_dim=128.
    hidden_size = 256
    num_heads = 2
    max_seq_len = 16
    batch = 2
    seq_len = 8
    head_dim = hidden_size // num_heads

    cos, sin = get_cos_sin_cache(hidden_size, num_heads, max_seq_len)
    tables = make_rope_tables(cos, sin, head_dim)        # hoisted: built once

    key = jax.random.PRNGKey(0)
    x = jax.random.normal(key, (batch, seq_len, num_heads, head_dim),
                          dtype=jnp.float32)

    # Prefill, unaligned pos (lo + hi table-block path).
    out = jax.block_until_ready(
        llama_ms_rotary_embedding(x, cos, sin, 3, tables=tables))
    ref = _reference_forward(x, cos, sin, 3)
    assert out.shape == x.shape and out.dtype == x.dtype
    assert jnp.allclose(out, ref, atol=1e-5, rtol=1e-5), "prefill pos=3 mismatch"

    # Prefill, tile-aligned pos (single table-block path).
    out0 = jax.block_until_ready(
        llama_ms_rotary_embedding(x, cos, sin, 8, tables=tables))
    ref0 = _reference_forward(x, cos, sin, 8)
    assert jnp.allclose(out0, ref0, atol=1e-5, rtol=1e-5), "prefill pos=8 mismatch"

    # Decode (S == 1) with a dynamic (scalar-prefetched) position.
    x_dec = jax.random.normal(jax.random.PRNGKey(1),
                              (8, 1, num_heads, head_dim), dtype=jnp.float32)
    out_dec = jax.block_until_ready(
        llama_ms_rotary_embedding(x_dec, cos, sin, jnp.int32(5), tables=tables))
    ref_dec = _reference_forward(x_dec, cos, sin, 5)
    assert jnp.allclose(out_dec, ref_dec, atol=1e-5, rtol=1e-5), "decode mismatch"

    print("KERNEL_OK")
</pallas_src>

<mosaic_0001>
module attributes {stable_mosaic.version = 11 : i64} {
  func.func @_rope_prefill_kernel(%arg0: i32, %arg1: i32, %arg2: memref<1x8x256xf32, #tpu.memory_space<vmem>>, %arg3: memref<8x256xf32, #tpu.memory_space<vmem>>, %arg4: memref<8x256xf32, #tpu.memory_space<vmem>>, %arg5: memref<1x8x256xf32, #tpu.memory_space<vmem>>) attributes {dimension_semantics = [#tpu.dimension_semantics<parallel>, #tpu.dimension_semantics<parallel>], iteration_bounds = array<i64: 1, 2>, scalar_prefetch = 0 : i64, scratch_operands = 0 : i64, tpu.core_type = #tpu.core_type<tc>, window_params = [{transform_indices = @transform_0, window_bounds = array<i64: 1, 8, 256>}, {transform_indices = @transform_1, window_bounds = array<i64: 8, 256>}, {transform_indices = @transform_2, window_bounds = array<i64: 8, 256>}, {transform_indices = @transform_3, window_bounds = array<i64: 1, 8, 256>}]} {
    %c3 = arith.constant 3 : index
    %c0 = arith.constant 0 : index
    %0 = vector.load %arg3[%c3, %c0] : memref<8x256xf32, #tpu.memory_space<vmem>>, vector<5x256xf32>
    %c0_0 = arith.constant 0 : index
    %c0_1 = arith.constant 0 : index
    %1 = vector.load %arg4[%c0_0, %c0_1] : memref<8x256xf32, #tpu.memory_space<vmem>>, vector<3x256xf32>
    %2 = tpu.concatenate %0, %1 in 0 : vector<5x256xf32>, vector<3x256xf32> -> vector<8x256xf32>
    %c0_2 = arith.constant 0 : index
    %c0_3 = arith.constant 0 : index
    %c0_4 = arith.constant 0 : index
    %3 = vector.load %arg2[%c0_2, %c0_3, %c0_4] : memref<1x8x256xf32, #tpu.memory_space<vmem>>, vector<1x8x256xf32>
    %4 = vector.shape_cast %3 : vector<1x8x256xf32> to vector<8x256xf32>
    %5 = vector.extract_strided_slice %2 {offsets = [0, 0], sizes = [8, 128], strides = [1, 1]} : vector<8x256xf32> to vector<8x128xf32>
    %6 = tpu.concatenate %5, %5 in 1 : vector<8x128xf32>, vector<8x128xf32> -> vector<8x256xf32>
    %7 = vector.extract_strided_slice %2 {offsets = [0, 128], sizes = [8, 128], strides = [1, 1]} : vector<8x256xf32> to vector<8x128xf32>
    %8 = tpu.concatenate %7, %7 in 1 : vector<8x128xf32>, vector<8x128xf32> -> vector<8x256xf32>
    %c255_i32 = arith.constant 255 : i32
    %9 = tpu.dynamic_rotate %4 by %c255_i32 dim 1 : vector<8x256xf32>, i32 -> vector<8x256xf32>
    %c1_i32 = arith.constant 1 : i32
    %10 = tpu.dynamic_rotate %4 by %c1_i32 dim 1 : vector<8x256xf32>, i32 -> vector<8x256xf32>
    %11 = tpu.iota {dimensions = array<i32: 1>} : vector<8x256xi32>
    %c1_i32_5 = arith.constant 1 : i32
    %12 = vector.broadcast %c1_i32_5 : i32 to vector<8x256xi32>
    %13 = arith.andi %11, %12 : vector<8x256xi32>
    %c0_i32 = arith.constant 0 : i32
    %14 = vector.broadcast %c0_i32 : i32 to vector<8x256xi32>
    %15 = arith.cmpi eq, %13, %14 : vector<8x256xi32>
    %16 = arith.select %15, %9, %10 : vector<8x256xi1>, vector<8x256xf32>
    %17 = arith.mulf %4, %6 : vector<8x256xf32>
    %18 = arith.mulf %16, %8 : vector<8x256xf32>
    %19 = arith.addf %17, %18 : vector<8x256xf32>
    %c0_6 = arith.constant 0 : index
    %c0_7 = arith.constant 0 : index
    %c0_8 = arith.constant 0 : index
    %20 = vector.load %arg5[%c0_6, %c0_7, %c0_8] : memref<1x8x256xf32, #tpu.memory_space<vmem>>, vector<1x8x256xf32>
    %21 = vector.shape_cast %20 : vector<1x8x256xf32> to vector<8x256xf32>
    %22 = vector.shape_cast %19 : vector<8x256xf32> to vector<1x8x256xf32>
    tpu.vector_store %arg5[%c0_6, %c0_7, %c0_8], %22 {strides = array<i32>} : memref<1x8x256xf32, #tpu.memory_space<vmem>>, vector<1x8x256xf32>,
    return
  }
  func.func @transform_0(%arg0: i32, %arg1: i32) -> (i32, i32, i32) {
    %c0_i32 = arith.constant 0 : i32
    %c0_i32_0 = arith.constant 0 : i32
    return %arg1, %arg0, %c0_i32 : i32, i32, i32
  }
  func.func @transform_1(%arg0: i32, %arg1: i32) -> (i32, i32) {
    %c0_i32 = arith.constant 0 : i32
    %0 = arith.addi %c0_i32, %arg0 : i32
    %c0_i32_0 = arith.constant 0 : i32
    %c0_i32_1 = arith.constant 0 : i32
    return %0, %c0_i32_0 : i32, i32
  }
  func.func @transform_2(%arg0: i32, %arg1: i32) -> (i32, i32) {
    %c0_i32 = arith.constant 0 : i32
    %0 = arith.addi %c0_i32, %arg0 : i32
    %c1_i32 = arith.constant 1 : i32
    %1 = arith.addi %0, %c1_i32 : i32
    %c1_i32_0 = arith.constant 1 : i32
    %2 = arith.minsi %1, %c1_i32_0 : i32
    %c0_i32_1 = arith.constant 0 : i32
    %c0_i32_2 = arith.constant 0 : i32
    return %2, %c0_i32_1 : i32, i32
  }
  func.func @transform_3(%arg0: i32, %arg1: i32) -> (i32, i32, i32) {
    %c0_i32 = arith.constant 0 : i32
    %c0_i32_0 = arith.constant 0 : i32
    return %arg1, %arg0, %c0_i32 : i32, i32, i32
  }
}

</mosaic_0001>

<llo_original>
// kernel: tpu_custom_call.1
$region0: #{tpu_custom_call.1}
  #allocation0 [shape = 'u32[]', space=smem, size = 0x4, offset = 0x4, fixed_abs, tag = 'smem constant byte address 0x4 - core index']
  #allocation1 [shape = 'u32[144,128]{1,0:T(1,128)}', space=vmem, size = 0x12000, scoped, tag = 'internal scratch']
  %s0 = inlined_call_operand.hbm [shape: f32[2,8,256], index: 0, kind: input, shape index: {}]
  %s1 = inlined_call_operand.hbm [shape: f32[16,256], index: 1, kind: input, shape index: {}]
  %s2 = inlined_call_operand.hbm [shape: f32[16,256], index: 2, kind: input, shape index: {}]
  %s3 = inlined_call_operand.hbm [shape: f32[2,8,256], index: 3, kind: output, shape index: {}]
  %s4 = sld [smem:[#allocation0]]
  $region57: #{tpu_custom_call.1} parent=0
    _
  %s6 = ssub.s32 1, %s4
  %s7 = scalar_select 0, %s6, %s4
  $region1: #{tpu_custom_call.1} parent=0
    #allocation2 [shape = 'u8[16384]{0}', space=vmem, size = 0x4000, scoped, tag = 'input window, operand 0']
    #allocation3 [shape = 's32[2]{0}', space=sflag, size = 0x8, scoped, tag = 'scoped memory for tpu_custom_call.1']
    #allocation4 [shape = 's32[2]{0}', space=sflag, size = 0x8, scoped, tag = 'scoped memory for tpu_custom_call.1']
    #allocation5 [shape = 'u8[8192]{0}', space=vmem, size = 0x2000, scoped, tag = 'input window, operand 1, single buffered']
    #allocation6 [shape = 's32[1]{0}', space=sflag, size = 0x4, scoped, tag = 'scoped memory for tpu_custom_call.1']
    #allocation7 [shape = 'u8[8192]{0}', space=vmem, size = 0x2000, scoped, tag = 'input window, operand 2, single buffered']
    #allocation8 [shape = 'u8[16384]{0}', space=vmem, size = 0x4000, scoped, tag = 'output window, operand 0']
    %8 = vsyncpa [#allocation3], 0
    %s9 = scalar_lea.sflag [#allocation3], 1
    %10 = vsyncpa %s9, 0
    %11 = vsyncpa [#allocation6], 0
    %12 = vsyncpa [#allocation4], 0
    %s13 = scalar_lea.sflag [#allocation4], 1
    %14 = vsyncpa %s13, 0
    loop: start=0, step=1, limit=4
    $region2: #{tpu_custom_call.1} parent=1 // loop_pre_header
      _
    $region3: #{tpu_custom_call.1} parent=1 // loop_header
      %s16 = sphi 0, %s20
      %p17 = scmp.ge.s32.totalorder %s16, 4
      %s23 = sphi 0, %s35
      %s24 = sphi 0, %s31
      %s25 = sphi 0, %s23
      %s26 = sphi 0, %s24
      %s27 = sphi 0, %s25
      %s28 = sphi 0, %s26
      %s40 = sphi 0, %s42
      %s43 = sphi 0, %s40
      %s44 = sphi 0, %s43
      %s60 = sphi 0, %s44
      %s66 = sphi 0, %s68
      %s69 = sphi 0, %s66
      %s70 = sphi 0, %s69
      %s86 = sphi 0, %s70
      %s98 = sphi 0, %s100
      %s101 = sphi 0, %s98
      %s102 = sphi 0, %s101
      %s118 = sphi 0, %s102
      %s126 = sphi 0, %s128
      %s129 = sphi 0, %s126
      %s130 = sphi 0, %s129
      %s146 = sphi 0, %s130
    $region4: #{tpu_custom_call.1} parent=1 // loop_header_branch
      %19 = sbr.rel (%p17) target = $region8
    $region5: #{tpu_custom_call.1} parent=1 // loop_body
      %s21 = ssub.s32 %s16, 1
      %s22 = ssub.s32 %s16, 2
      %s29 = sadd.s32 1, %s24
      %p30 = scmp.ge.s32.totalorder %s29, 2
      %s31 = scalar_select %p30, 0, %s29
      %s32 = sadd.s32 1, %s23
      %s33 = scalar_select %p30, %s32, %s23
      %p34 = scmp.ge.s32.totalorder %s33, 1
      %s35 = scalar_select %p34, 0, %s33
      %s36 = ssub.s32 %s24, %s31
      %s37 = ssub.s32 %s23, %s35
      %s38 = sor.u32 %s36, %s37
      %p39 = scmp.eq.s32.totalorder %s38, 0
      %s41 = sadd.s32 %s40, 1
      %s42 = scalar_select %p39, %s40, %s41
      %p45 = pneg %p39
      %p46 = scmp.eq.s32.totalorder %s16, 1
      %p47 = por %p45, %p46
      %p48 = scmp.ne.s32.totalorder %s40, %s43
      %p49 = scmp.eq.s32.totalorder %s16, 0
      %p50 = por %p48, %p49
      %p51 = scmp.ne.s32.totalorder %s40, %s43
      %p52 = scmp.eq.s32.totalorder %s21, 1
      %p53 = por %p51, %p52
      %p54 = scmp.ne.s32.totalorder %s43, %s44
      %p55 = scmp.eq.s32.totalorder %s21, 0
      %p56 = por %p54, %p55
      %p57 = scmp.ne.s32.totalorder %s43, %s44
      %p58 = scmp.eq.s32.totalorder %s22, 1
      %p59 = por %p57, %p58
      %p61 = scmp.ne.s32.totalorder %s44, %s60
      %p62 = scmp.eq.s32.totalorder %s22, 0
      %p63 = por %p61, %p62
      %s64 = ssub.s32 %s23, %s35
      %p65 = scmp.eq.s32.totalorder %s64, 0
      %s67 = sadd.s32 %s66, 1
      %s68 = scalar_select %p65, %s66, %s67
      %p71 = pneg %p65
      %p72 = scmp.eq.s32.totalorder %s16, 1
      %p73 = por %p71, %p72
      %p74 = scmp.ne.s32.totalorder %s66, %s69
      %p75 = scmp.eq.s32.totalorder %s16, 0
      %p76 = por %p74, %p75
      %p77 = scmp.ne.s32.totalorder %s66, %s69
      %p78 = scmp.eq.s32.totalorder %s21, 1
      %p79 = por %p77, %p78
      %p80 = scmp.ne.s32.totalorder %s69, %s70
      %p81 = scmp.eq.s32.totalorder %s21, 0
      %p82 = por %p80, %p81
      %p83 = scmp.ne.s32.totalorder %s69, %s70
      %p84 = scmp.eq.s32.totalorder %s22, 1
      %p85 = por %p83, %p84
      %p87 = scmp.ne.s32.totalorder %s70, %s86
      %p88 = scmp.eq.s32.totalorder %s22, 0
      %p89 = por %p87, %p88
      %s90 = sadd.s32 %s23, 1
      %p91 = scmp.lt.s32.totalorder %s90, 1
      %s92 = scalar_select %p91, %s90, 1
      %s93 = sadd.s32 %s35, 1
      %p94 = scmp.lt.s32.totalorder %s93, 1
      %s95 = scalar_select %p94, %s93, 1
      %s96 = ssub.s32 %s92, %s95
      %p97 = scmp.eq.s32.totalorder %s96, 0
      %s99 = sadd.s32 %s98, 1
      %s100 = scalar_select %p97, %s98, %s99
      %p103 = pneg %p97
      %p104 = scmp.eq.s32.totalorder %s16, 1
      %p105 = por %p103, %p104
      %p106 = scmp.ne.s32.totalorder %s98, %s101
      %p107 = scmp.eq.s32.totalorder %s16, 0
      %p108 = por %p106, %p107
      %p109 = scmp.ne.s32.totalorder %s98, %s101
      %p110 = scmp.eq.s32.totalorder %s21, 1
      %p111 = por %p109, %p110
      %p112 = scmp.ne.s32.totalorder %s101, %s102
      %p113 = scmp.eq.s32.totalorder %s21, 0
      %p114 = por %p112, %p113
      %p115 = scmp.ne.s32.totalorder %s101, %s102
      %p116 = scmp.eq.s32.totalorder %s22, 1
      %p117 = por %p115, %p116
      %p119 = scmp.ne.s32.totalorder %s102, %s118
      %p120 = scmp.eq.s32.totalorder %s22, 0
      %p121 = por %p119, %p120
      %s122 = ssub.s32 %s24, %s31
      %s123 = ssub.s32 %s23, %s35
      %s124 = sor.u32 %s122, %s123
      %p125 = scmp.eq.s32.totalorder %s124, 0
      %s127 = sadd.s32 %s126, 1
      %s128 = scalar_select %p125, %s126, %s127
      %p131 = pneg %p125
      %p132 = scmp.eq.s32.totalorder %s16, 1
      %p133 = por %p131, %p132
      %p134 = scmp.ne.s32.totalorder %s126, %s129
      %p135 = scmp.eq.s32.totalorder %s16, 0
      %p136 = por %p134, %p135
      %p137 = scmp.ne.s32.totalorder %s126, %s129
      %p138 = scmp.eq.s32.totalorder %s21, 1
      %p139 = por %p137, %p138
      %p140 = scmp.ne.s32.totalorder %s129, %s130
      %p141 = scmp.eq.s32.totalorder %s21, 0
      %p142 = por %p140, %p141
      %p143 = scmp.ne.s32.totalorder %s129, %s130
      %p144 = scmp.eq.s32.totalorder %s22, 1
      %p145 = por %p143, %p144
      %p147 = scmp.ne.s32.totalorder %s130, %s146
      %p148 = scmp.eq.s32.totalorder %s22, 0
      %p149 = por %p147, %p148
      %p150 = scmp.le.s32.totalorder 1, %s16
      %p151 = scmp.lt.s32.totalorder %s16, 3
      %p152 = pnand %p150, %p151
      %p153 = pneg %p152
      // Predicated region
      $region9: #{tpu_custom_call.1} parent=5 // pred_check
        _
      $region10: #{tpu_custom_call.1} parent=5 // pred_check_branch
        %155 = sbr.rel (%p152) target = $region12
      $region11: #{tpu_custom_call.1} parent=5 // pred_region
        %s156 = ssub.s32 %s16, 1
        // Predicated region
        $region13: #{tpu_custom_call.1} parent=11 // pred_check
          %p157 = pneg %p82
        $region14: #{tpu_custom_call.1} parent=11 // pred_check_branch
          %159 = sbr.rel (%p157) target = $region16
        $region15: #{tpu_custom_call.1} parent=11 // pred_region
          %s161 = ssub.s32 256, 256
          %162 = vsyncadd [#allocation6], %s161
          %s163 = smul.addr %s25, 2
          %s164 = smul.addr %s163, 128
          %s165 = scalar_lea.hbm %s1, %s164
          %s167 = sshll.u32 [#allocation5], 4
          %s168 = int_to_ptr.vmem [resolvable:$true] %s167
          %170 = dma.hbm_to_vmem [thread:$0]  %s165, 256, %s168, [#allocation6]
        $region16: #{tpu_custom_call.1} parent=11 // pred_fallthru
          _
        // Predicated region
        $region17: #{tpu_custom_call.1} parent=11 // pred_check
          %p171 = pneg %p114
        $region18: #{tpu_custom_call.1} parent=11 // pred_check_branch
          %173 = sbr.rel (%p171) target = $region20
        $region19: #{tpu_custom_call.1} parent=11 // pred_region
          %s174 = sadd.s32 %s25, 1
          %p175 = scmp.lt.s32.totalorder %s174, 1
          %s176 = scalar_select %p175, %s174, 1
          %s178 = ssub.s32 256, 256
          %179 = vsyncadd [#allocation6], %s178
          %s180 = smul.addr %s176, 2
          %s181 = smul.addr %s180, 128
          %s182 = scalar_lea.hbm %s2, %s181
          %s184 = sshll.u32 [#allocation7], 4
          %s185 = int_to_ptr.vmem [resolvable:$true] %s184
          %187 = dma.hbm_to_vmem [thread:$0]  %s182, 256, %s185, [#allocation6]
        $region20: #{tpu_custom_call.1} parent=11 // pred_fallthru
          _
      $region12: #{tpu_custom_call.1} parent=5 // pred_fallthru
        _
      %p188 = scmp.lt.s32.totalorder %s16, 2
      // Predicated region
      $region21: #{tpu_custom_call.1} parent=5 // pred_check
        %p189 = pneg %p188
      $region22: #{tpu_custom_call.1} parent=5 // pred_check_branch
        %191 = sbr.rel (%p189) target = $region24
      $region23: #{tpu_custom_call.1} parent=5 // pred_region
        // Predicated region
        $region25: #{tpu_custom_call.1} parent=23 // pred_check
          %p192 = pneg %p50
        $region26: #{tpu_custom_call.1} parent=23 // pred_check_branch
          %194 = sbr.rel (%p192) target = $region28
        $region27: #{tpu_custom_call.1} parent=23 // pred_region
          %s195 = sand.u32 %s40, 1
          %s196 = scalar_lea.sflag [#allocation3], %s195
          %s197 = sand.u32 %s40, 1
          %s198 = smul.addr %s197, 16
          %s199 = scalar_lea.vmem [#allocation2], %s198
          %s201 = ssub.s32 256, 256
          %202 = vsyncadd %s196, %s201
          %s203 = smul.addr %s23, 2
          %s204 = smul.addr %s24, 2
          %s205 = sadd.s32 %s203, %s204
          %s206 = smul.addr %s205, 128
          %s207 = scalar_lea.hbm %s0, %s206
          %s209 = sshll.u32 %s199, 4
          %s210 = int_to_ptr.vmem [resolvable:$true] %s209
          %212 = dma.hbm_to_vmem [thread:$0]  %s207, 256, %s210, %s196
        $region28: #{tpu_custom_call.1} parent=23 // pred_fallthru
          _
      $region24: #{tpu_custom_call.1} parent=5 // pred_fallthru
        _
      %p213 = scmp.le.s32.totalorder 1, %s16
      %p214 = scmp.lt.s32.totalorder %s16, 3
      %p215 = pnand %p213, %p214
      %p216 = pneg %p215
      // Predicated region
      $region29: #{tpu_custom_call.1} parent=5 // pred_check
        _
      $region30: #{tpu_custom_call.1} parent=5 // pred_check_branch
        %218 = sbr.rel (%p215) target = $region32
      $region31: #{tpu_custom_call.1} parent=5 // pred_region
        %s219 = ssub.s32 %s16, 1
        %s220 = sand.u32 %s43, 1
        %s221 = scalar_lea.sflag [#allocation3], %s220
        %s222 = sand.u32 %s43, 1
        %s223 = smul.addr %s222, 16
        %s224 = scalar_lea.vmem [#allocation2], %s223
        // Predicated region
        $region33: #{tpu_custom_call.1} parent=31 // pred_check
          %p225 = pneg %p56
        $region34: #{tpu_custom_call.1} parent=31 // pred_check_branch
          %227 = sbr.rel (%p225) target = $region36
        $region35: #{tpu_custom_call.1} parent=31 // pred_region
          %228 = dma.done %s221, 256
        $region36: #{tpu_custom_call.1} parent=31 // pred_fallthru
          _
        // Predicated region
        $region37: #{tpu_custom_call.1} parent=31 // pred_check
          %p229 = pneg %p82
        $region38: #{tpu_custom_call.1} parent=31 // pred_check_branch
          %231 = sbr.rel (%p229) target = $region40
        $region39: #{tpu_custom_call.1} parent=31 // pred_region
          %232 = dma.done [#allocation6], 256
        $region40: #{tpu_custom_call.1} parent=31 // pred_fallthru
          _
        // Predicated region
        $region41: #{tpu_custom_call.1} parent=31 // pred_check
          %p233 = pneg %p114
        $region42: #{tpu_custom_call.1} parent=31 // pred_check_branch
          %235 = sbr.rel (%p233) target = $region44
        $region43: #{tpu_custom_call.1} parent=31 // pred_region
          %236 = dma.done [#allocation6], 256
        $region44: #{tpu_custom_call.1} parent=31 // pred_fallthru
          _
        %s237 = sand.u32 %s43, 1
        %s238 = scalar_lea.sflag [#allocation3], %s237
        %s239 = sand.u32 %s43, 1
        %s240 = smul.addr %s239, 16
        %s241 = scalar_lea.vmem [#allocation2], %s240
        %p242 = pneg %p56
        %p243 = pneg %p53
        %p244 = pneg %p82
        %p245 = pneg %p79
        %p246 = pneg %p114
        %p247 = pneg %p111
        %p248 = pneg %p142
        %p249 = pneg %p139
        %s250 = sand.u32 %s129, 1
        %s251 = scalar_lea.sflag [#allocation4], %s250
        %s252 = sand.u32 %s129, 1
        %s253 = smul.addr %s252, 16
        %s254 = scalar_lea.vmem [#allocation8], %s253
        %s255 = sadd.s32 %s25, 1
        %p256 = scmp.lt.s32.totalorder %s255, 1
        %s257 = scalar_select %p256, %s255, 1
        %v258 = vld [vmem:[#allocation5] sm:$0xf8]
        %v259 = vld [vmem:[#allocation5 + $0x8] sm:$0xf8]
        %v260 = vld [vmem:[#allocation7] sm:$0x7]
        %v261 = vld [vmem:[#allocation7 + $0x8] sm:$0x7]
        %v264 = vrot.slane %v258, 3
        %v265 = vrot.slane %v259, 3
        %v270 = vrot.slane %v260, 3
        %v271 = vrot.slane %v261, 3
        %vm274 = vcmask 1044480
        %v275 = vsel %vm274, %v264, %v270
        %v276 = vsel %vm274, %v265, %v271
        %v277 = vld [vmem:[%s224] sm:$0xff]
        %v278 = vld [vmem:[%s224 + $0x8] sm:$0xff]
        %279 = vrot.lane.b32.xlu0 %v277, 127
        %v280 = vpop.permute.xlu0 %279
        %281 = vrot.lane.b32.xlu0 %v278, 127
        %v282 = vpop.permute.xlu0 %281
        %v283 = vlaneseq
        %v284 = vand.u32 %v283, 127
        %vm285 = vcmp.lt.s32.totalorder %v284, 127
        %v286 = vsel %vm285, %v280, %v282
        %v287 = vsel %vm285, %v282, %v280
        %288 = vrot.lane.b32.xlu0 %v277, 1
        %v289 = vpop.permute.xlu0 %288
        %290 = vrot.lane.b32.xlu0 %v278, 1
        %v291 = vpop.permute.xlu0 %290
        %vm292 = vcmp.lt.s32.totalorder %v284, 1
        %v293 = vsel %vm292, %v289, %v291
        %v294 = vsel %vm292, %v291, %v289
        %v295 = vadd.s32 %v284, 128
        %v296 = vand.u32 %v284, 1
        %v297 = vand.u32 %v295, 1
        %vm298 = vcmp.eq.s32.totalorder %v296, 0
        %vm299 = vcmp.eq.s32.totalorder %v297, 0
        %v300 = vsel %vm298, %v286, %v294
        %v301 = vsel %vm299, %v287, %v293
        %v302 = vmul.f32 %v277, %v275
        %v303 = vmul.f32 %v278, %v275
        %v304 = vmul.f32 %v300, %v276
        %v305 = vmul.f32 %v301, %v276
        %v306 = vadd.f32 %v302, %v304
        %v307 = vadd.f32 %v303, %v305
        %308 = vst [vmem:[%s254] sm:$0xff] %v306
        %309 = vst [vmem:[%s254 + $0x8] sm:$0xff] %v307
        %s310 = sand.u32 %s129, 1
        %s311 = scalar_lea.sflag [#allocation4], %s310
        %s312 = sand.u32 %s129, 1
        %s313 = smul.addr %s312, 16
        %s314 = scalar_lea.vmem [#allocation8], %s313
        // Predicated region
        $region45: #{tpu_custom_call.1} parent=31 // pred_check
          %p315 = pneg %p139
        $region46: #{tpu_custom_call.1} parent=31 // pred_check_branch
          %317 = sbr.rel (%p315) target = $region48
        $region47: #{tpu_custom_call.1} parent=31 // pred_region
          %s319 = ssub.s32 256, 256
          %320 = vsyncadd %s311, %s319
          %s321 = smul.addr %s25, 2
          %s322 = smul.addr %s26, 2
          %s323 = sadd.s32 %s321, %s322
          %s324 = smul.addr %s323, 128
          %s325 = scalar_lea.hbm %s3, %s324
          %s327 = sshll.u32 %s314, 4
          %s328 = int_to_ptr.vmem [resolvable:$true] %s327
          %330 = dma.vmem_to_hbm [thread:$0]  %s328, 256, %s325, %s311
        $region48: #{tpu_custom_call.1} parent=31 // pred_fallthru
          _
      $region32: #{tpu_custom_call.1} parent=5 // pred_fallthru
        _
      %p331 = scmp.le.s32.totalorder 2, %s16
      // Predicated region
      $region49: #{tpu_custom_call.1} parent=5 // pred_check
        %p332 = pneg %p331
      $region50: #{tpu_custom_call.1} parent=5 // pred_check_branch
        %334 = sbr.rel (%p332) target = $region52
      $region51: #{tpu_custom_call.1} parent=5 // pred_region
        %s335 = ssub.s32 %s16, 2
        // Predicated region
        $region53: #{tpu_custom_call.1} parent=51 // pred_check
          %p336 = pneg %p145
        $region54: #{tpu_custom_call.1} parent=51 // pred_check_branch
          %338 = sbr.rel (%p336) target = $region56
        $region55: #{tpu_custom_call.1} parent=51 // pred_region
          %s339 = sand.u32 %s130, 1
          %s340 = scalar_lea.sflag [#allocation4], %s339
          %s341 = sand.u32 %s130, 1
          %s342 = smul.addr %s341, 16
          %s343 = scalar_lea.vmem [#allocation8], %s342
          %344 = dma.done %s340, 256
        $region56: #{tpu_custom_call.1} parent=51 // pred_fallthru
          _
      $region52: #{tpu_custom_call.1} parent=5 // pred_fallthru
        _
    $region6: #{tpu_custom_call.1} parent=1 // loop_footer
      %s20 = sadd.s32 1, %s16
    $region7: #{tpu_custom_call.1} parent=1 // loop_footer_branch
      %15 = sbr.rel target = $region3
    $region8: #{tpu_custom_call.1} parent=1 // loop_exit
      _
    %345 = vsyncpa [#allocation3], 1
    %s346 = scalar_lea.sflag [#allocation3], 1
    %347 = vsyncpa %s346, 1
    %348 = vsyncpa [#allocation6], 1
    %349 = vsyncpa [#allocation4], 1
    %s350 = scalar_lea.sflag [#allocation4], 1
    %351 = vsyncpa %s350, 1

</llo_original>
